<compile_context>
chip_gen: v7x
topology: tpu7x:2x2x1
jax: 0.10.0
libtpu: 0.0.40
codegen_flags: <defaults>
</compile_context>

<pallas_src>
import functools

import jax
import jax.numpy as jnp
from jax.experimental import pallas as pl
from jax.experimental.pallas import tpu as pltpu


def _round_up(x, m):
    return (x + m - 1) // m * m


def _rnn_cell_kernel(x_ref, h_ref, wx_ref, wh_ref, b_ref, scale_ref, shift_ref,
                     out_ref, *, layer_norm: bool, use_relu: bool,
                     hidden_size: int):
    # a = x @ W_x + h @ W_h + b   (two MXU matmuls, f32 accumulate — concat-free)
    a = jnp.dot(x_ref[...], wx_ref[...], preferred_element_type=jnp.float32)
    a = a + jnp.dot(h_ref[...], wh_ref[...], preferred_element_type=jnp.float32)
    a = a + b_ref[...].astype(jnp.float32)          # (tm, H) + (1, H) broadcast

    if layer_norm:
        # torch.Tensor.var() default is unbiased (ddof=1) -> divide by H-1.
        mu = jnp.mean(a, axis=-1, keepdims=True)
        diff = a - mu
        inv_hm1 = jnp.float32(1.0 / (hidden_size - 1))   # constant mul, no divide
        var = jnp.sum(diff * diff, axis=-1, keepdims=True) * inv_hm1
        a = diff * jax.lax.rsqrt(var + jnp.float32(1e-5))
        a = scale_ref[...].astype(jnp.float32) * a + shift_ref[...].astype(jnp.float32)

    a = jnp.maximum(a, 0.0) if use_relu else jnp.tanh(a)
    out_ref[...] = a.astype(out_ref.dtype)


def rnn_cell_forward(x, h, weight, bias, scale=None, shift=None, *,
                     layer_norm=False, use_relu=False,
                     block_batch=None, compute_dtype=None):
    """RNN_cell forward: returns the new hidden state h' of shape (N, H)."""
    N, Fin = x.shape
    H = weight.shape[1]
    assert weight.shape[0] == Fin + H
    out_dtype = x.dtype

    if h is None:
        h = jnp.zeros((N, H), dtype=x.dtype)
    if scale is None:
        scale = jnp.ones((1, H), dtype=jnp.float32)
    if shift is None:
        shift = jnp.zeros((1, H), dtype=jnp.float32)

    # Split the weight once (cheap glue on a static param) instead of
    # concatenating the activations every step.
    w_x = weight[:Fin, :]
    w_h = weight[Fin:, :]

    if compute_dtype is not None:
        x = x.astype(compute_dtype)
        h = h.astype(compute_dtype)
        w_x = w_x.astype(compute_dtype)
        w_h = w_h.astype(compute_dtype)
    in_dtype = x.dtype

    # Epilogue params stay f32 (v5e VPU/EUP have no bf16 path).
    bias = bias.astype(jnp.float32)
    scale = scale.astype(jnp.float32)
    shift = shift.astype(jnp.float32)

    # Batch tile: multiple of sublane packing (16 covers bf16, 8 covers f32).
    sub = 16 if jnp.dtype(in_dtype).itemsize < 4 else 8
    if block_batch is None:
        block_batch = 256
    tm = max(sub, _round_up(min(block_batch, _round_up(N, sub)), sub))
    n_pad = _round_up(N, tm)
    if n_pad != N:
        x = jnp.pad(x, ((0, n_pad - N), (0, 0)))
        h = jnp.pad(h, ((0, n_pad - N), (0, 0)))
    n_tiles = n_pad // tm

    itm_in = jnp.dtype(in_dtype).itemsize
    itm_out = jnp.dtype(out_dtype).itemsize

    # Advisory cost estimate so XLA schedules surrounding per-step glue sanely.
    flops = 2 * n_pad * (Fin + H) * H
    transcendentals = (0 if use_relu else n_pad * H) + (n_pad if layer_norm else 0)
    bytes_accessed = int(n_pad * Fin * itm_in + n_pad * H * itm_in
                         + (Fin + H) * H * itm_in + 3 * H * 4
                         + n_pad * H * itm_out)
    cost = pl.CostEstimate(flops=flops, transcendentals=transcendentals,
                           bytes_accessed=bytes_accessed)

    # VMEM budget: worst-case double-buffering of every operand + headroom.
    # Clamp to 48 MiB so the limit is valid on v7x (64 MiB physical) while
    # raising v5e's 16 MiB scoped default.
    vmem_est = 2 * (tm * Fin * itm_in + tm * H * itm_in
                    + Fin * H * itm_in + H * H * itm_in
                    + 3 * H * 4 + tm * H * itm_out)
    vmem_limit = int(min(max(2 * vmem_est + (1 << 20), 32 << 20), 48 << 20))

    kernel = functools.partial(_rnn_cell_kernel, layer_norm=layer_norm,
                               use_relu=use_relu, hidden_size=H)

    out = pl.pallas_call(
        kernel,
        out_shape=jax.ShapeDtypeStruct((n_pad, H), out_dtype),
        grid_spec=pltpu.PrefetchScalarGridSpec(
            num_scalar_prefetch=0,
            grid=(n_tiles,),
            in_specs=[
                pl.BlockSpec((tm, Fin), lambda i: (i, 0)),   # x tile   (pipelined)
                pl.BlockSpec((tm, H), lambda i: (i, 0)),     # h tile   (pipelined)
                pl.BlockSpec((Fin, H), lambda i: (0, 0)),    # W_x      (resident)
                pl.BlockSpec((H, H), lambda i: (0, 0)),      # W_h      (resident)
                pl.BlockSpec((1, H), lambda i: (0, 0)),      # bias
                pl.BlockSpec((1, H), lambda i: (0, 0)),      # LN scale
                pl.BlockSpec((1, H), lambda i: (0, 0)),      # LN shift
            ],
            # H kept whole per block so LayerNorm stats are over the full
            # hidden dim (no per-tile statistics, no padded-column bias).
            out_specs=pl.BlockSpec((tm, H), lambda i: (i, 0)),
        ),
        compiler_params=pltpu.CompilerParams(
            dimension_semantics=("parallel",),     # batch tiles -> megacore (v7x)
            vmem_limit_bytes=vmem_limit,
        ),
        cost_estimate=cost,
    )(x, h, w_x, w_h, bias, scale, shift)

    return out[:N] if n_pad != N else out


def _reference(x, h, weight, bias, scale, shift, *, layer_norm, use_relu):
    N, Fin = x.shape
    H = weight.shape[1]
    if h is None:
        h = jnp.zeros((N, H), dtype=x.dtype)
    xh = jnp.concatenate([x, h], axis=-1)
    a = xh @ weight + bias
    if layer_norm:
        mu = jnp.mean(a, axis=-1, keepdims=True)
        var = jnp.var(a, axis=-1, keepdims=True, ddof=1)   # torch Tensor.var()
        a = (a - mu) / jnp.sqrt(var + 1e-05)
        a = scale * a + shift
    return jnp.maximum(a, 0.0) if use_relu else jnp.tanh(a)


if __name__ == "__main__":
    # Small deterministic example consistent with the module's forward:
    #   x: (batch, input_size), hidden state: (batch, hidden_size)
    batch, input_size, hidden_size = 64, 48, 128

    key = jax.random.PRNGKey(0)
    kx, kh, kw = jax.random.split(key, 3)

    x = jax.random.normal(kx, (batch, input_size), dtype=jnp.float32)
    h0 = jax.random.normal(kh, (batch, hidden_size), dtype=jnp.float32)

    # Deterministic parameter init (xavier_normal-style, per the tanh path).
    fan_in, fan_out = input_size + hidden_size, hidden_size
    std = (2.0 / (fan_in + fan_out)) ** 0.5
    weight = std * jax.random.normal(kw, (fan_in, fan_out), dtype=jnp.float32)
    bias_tanh = jnp.ones((1, hidden_size), dtype=jnp.float32)    # bias.fill_(1)
    bias_relu = jnp.zeros((1, hidden_size), dtype=jnp.float32)   # bias.fill_(0)
    scale = jnp.ones((1, hidden_size), dtype=jnp.float32)        # LN scale = 1
    shift = jnp.zeros((1, hidden_size), dtype=jnp.float32)       # LN shift = 0

    # Config 1: layer_norm + tanh, f32 matmul, multi-tile batch grid.
    h1 = rnn_cell_forward(x, h0, weight, bias_tanh, scale, shift,
                          layer_norm=True, use_relu=False, block_batch=32)
    h1 = jax.block_until_ready(h1)
    r1 = _reference(x, h0, weight, bias_tanh, scale, shift,
                    layer_norm=True, use_relu=False)
    assert h1.shape == (batch, hidden_size)
    assert jnp.allclose(h1, r1, atol=1e-4, rtol=1e-4)

    # Config 2: relu, no LayerNorm, h=None (zero initial state) path.
    h2 = rnn_cell_forward(x, None, weight, bias_relu, scale, shift,
                          layer_norm=False, use_relu=True, block_batch=32)
    h2 = jax.block_until_ready(h2)
    r2 = _reference(x, None, weight, bias_relu, scale, shift,
                    layer_norm=False, use_relu=True)
    assert jnp.allclose(h2, r2, atol=1e-4, rtol=1e-4)

    # Config 3: bf16 matmul operands (f32 accumulate + f32 epilogue) for
    # v6e/v7x MXU throughput; looser tolerance vs the f32 reference.
    h3 = rnn_cell_forward(x, h0, weight, bias_tanh, scale, shift,
                          layer_norm=True, use_relu=False, block_batch=32,
                          compute_dtype=jnp.bfloat16)
    h3 = jax.block_until_ready(h3)
    assert jnp.allclose(h3, r1, atol=0.1, rtol=0.1)

    print("KERNEL_OK")
</pallas_src>

<mosaic_0001>
module attributes {stable_mosaic.version = 11 : i64} {
  func.func @_rnn_cell_kernel(%arg0: i32, %arg1: memref<32x48xf32, #tpu.memory_space<vmem>>, %arg2: memref<32x128xf32, #tpu.memory_space<vmem>>, %arg3: memref<48x128xf32, #tpu.memory_space<vmem>>, %arg4: memref<128x128xf32, #tpu.memory_space<vmem>>, %arg5: memref<1x128xf32, #tpu.memory_space<vmem>>, %arg6: memref<1x128xf32, #tpu.memory_space<vmem>>, %arg7: memref<1x128xf32, #tpu.memory_space<vmem>>, %arg8: memref<32x128xf32, #tpu.memory_space<vmem>>) attributes {dimension_semantics = [#tpu.dimension_semantics<parallel>], iteration_bounds = array<i64: 2>, scalar_prefetch = 0 : i64, scratch_operands = 0 : i64, tpu.core_type = #tpu.core_type<tc>, window_params = [{transform_indices = @transform_0, window_bounds = array<i64: 32, 48>}, {transform_indices = @transform_1, window_bounds = array<i64: 32, 128>}, {pipeline_mode = #tpu.pipeline_mode<synchronous>, transform_indices = @transform_2, window_bounds = array<i64: 48, 128>}, {pipeline_mode = #tpu.pipeline_mode<synchronous>, transform_indices = @transform_3, window_bounds = array<i64: 128, 128>}, {pipeline_mode = #tpu.pipeline_mode<synchronous>, transform_indices = @transform_4, window_bounds = array<i64: 1, 128>}, {pipeline_mode = #tpu.pipeline_mode<synchronous>, transform_indices = @transform_5, window_bounds = array<i64: 1, 128>}, {pipeline_mode = #tpu.pipeline_mode<synchronous>, transform_indices = @transform_6, window_bounds = array<i64: 1, 128>}, {transform_indices = @transform_7, window_bounds = array<i64: 32, 128>}]} {
    %c0 = arith.constant 0 : index
    %c0_0 = arith.constant 0 : index
    %0 = vector.load %arg1[%c0, %c0_0] : memref<32x48xf32, #tpu.memory_space<vmem>>, vector<32x48xf32>
    %c0_1 = arith.constant 0 : index
    %c0_2 = arith.constant 0 : index
    %1 = vector.load %arg3[%c0_1, %c0_2] : memref<48x128xf32, #tpu.memory_space<vmem>>, vector<48x128xf32>
    %cst = arith.constant dense<0.000000e+00> : vector<32x128xf32>
    %2 = tpu.matmul %0, %1, %cst {dimension_numbers = #tpu.dot_dimension_numbers<[1], [0], [0], [1], [0, 0, 1, 1], [], []>} : vector<32x48xf32>, vector<48x128xf32>, vector<32x128xf32> -> vector<32x128xf32>
    %c0_3 = arith.constant 0 : index
    %c0_4 = arith.constant 0 : index
    %3 = vector.load %arg2[%c0_3, %c0_4] : memref<32x128xf32, #tpu.memory_space<vmem>>, vector<32x128xf32>
    %c0_5 = arith.constant 0 : index
    %c0_6 = arith.constant 0 : index
    %4 = vector.load %arg4[%c0_5, %c0_6] : memref<128x128xf32, #tpu.memory_space<vmem>>, vector<128x128xf32>
    %cst_7 = arith.constant dense<0.000000e+00> : vector<32x128xf32>
    %5 = tpu.matmul %3, %4, %cst_7 {dimension_numbers = #tpu.dot_dimension_numbers<[1], [0], [0], [1], [0, 0, 1, 1], [], []>} : vector<32x128xf32>, vector<128x128xf32>, vector<32x128xf32> -> vector<32x128xf32>
    %6 = arith.addf %2, %5 : vector<32x128xf32>
    %c0_8 = arith.constant 0 : index
    %c0_9 = arith.constant 0 : index
    %7 = vector.load %arg5[%c0_8, %c0_9] : memref<1x128xf32, #tpu.memory_space<vmem>>, vector<1x128xf32>
    %8 = vector.broadcast %7 : vector<1x128xf32> to vector<32x128xf32>
    %9 = arith.addf %6, %8 : vector<32x128xf32>
    %cst_10 = arith.constant dense<0.000000e+00> : vector<32xf32>
    %10 = vector.multi_reduction <add>, %9, %cst_10 [1] : vector<32x128xf32> to vector<32xf32>
    %11 = vector.shape_cast %10 : vector<32xf32> to vector<32x1xf32>
    %cst_11 = arith.constant 1.280000e+02 : f32
    %12 = vector.broadcast %cst_11 : f32 to vector<32x1xf32>
    %13 = arith.divf %11, %12 : vector<32x1xf32>
    %14 = vector.broadcast %13 : vector<32x1xf32> to vector<32x128xf32>
    %15 = arith.subf %9, %14 : vector<32x128xf32>
    %16 = arith.mulf %15, %15 : vector<32x128xf32>
    %cst_12 = arith.constant dense<0.000000e+00> : vector<32xf32>
    %17 = vector.multi_reduction <add>, %16, %cst_12 [1] : vector<32x128xf32> to vector<32xf32>
    %18 = vector.shape_cast %17 : vector<32xf32> to vector<32x1xf32>
    %cst_13 = arith.constant 0.00787401571 : f32
    %19 = vector.broadcast %cst_13 : f32 to vector<32x1xf32>
    %20 = arith.mulf %18, %19 : vector<32x1xf32>
    %cst_14 = arith.constant 9.99999974E-6 : f32
    %21 = vector.broadcast %cst_14 : f32 to vector<32x1xf32>
    %22 = arith.addf %20, %21 : vector<32x1xf32>
    %23 = math.rsqrt %22 : vector<32x1xf32>
    %24 = vector.broadcast %23 : vector<32x1xf32> to vector<32x128xf32>
    %25 = arith.mulf %15, %24 : vector<32x128xf32>
    %c0_15 = arith.constant 0 : index
    %c0_16 = arith.constant 0 : index
    %26 = vector.load %arg6[%c0_15, %c0_16] : memref<1x128xf32, #tpu.memory_space<vmem>>, vector<1x128xf32>
    %27 = vector.broadcast %26 : vector<1x128xf32> to vector<32x128xf32>
    %28 = arith.mulf %27, %25 : vector<32x128xf32>
    %c0_17 = arith.constant 0 : index
    %c0_18 = arith.constant 0 : index
    %29 = vector.load %arg7[%c0_17, %c0_18] : memref<1x128xf32, #tpu.memory_space<vmem>>, vector<1x128xf32>
    %30 = vector.broadcast %29 : vector<1x128xf32> to vector<32x128xf32>
    %31 = arith.addf %28, %30 : vector<32x128xf32>
    %32 = math.tanh %31 : vector<32x128xf32>
    %c0_19 = arith.constant 0 : index
    %c0_20 = arith.constant 0 : index
    %33 = vector.load %arg8[%c0_19, %c0_20] : memref<32x128xf32, #tpu.memory_space<vmem>>, vector<32x128xf32>
    tpu.vector_store %arg8[%c0_19, %c0_20], %32 {strides = array<i32>} : memref<32x128xf32, #tpu.memory_space<vmem>>, vector<32x128xf32>,
    return
  }
  func.func @transform_0(%arg0: i32) -> (i32, i32) {
    %c0_i32 = arith.constant 0 : i32
    %c0_i32_0 = arith.constant 0 : i32
    return %arg0, %c0_i32 : i32, i32
  }
  func.func @transform_1(%arg0: i32) -> (i32, i32) {
    %c0_i32 = arith.constant 0 : i32
    %c0_i32_0 = arith.constant 0 : i32
    return %arg0, %c0_i32 : i32, i32
  }
  func.func @transform_2(%arg0: i32) -> (i32, i32) {
    %c0_i32 = arith.constant 0 : i32
    %c0_i32_0 = arith.constant 0 : i32
    %c0_i32_1 = arith.constant 0 : i32
    return %c0_i32, %c0_i32_0 : i32, i32
  }
  func.func @transform_3(%arg0: i32) -> (i32, i32) {
    %c0_i32 = arith.constant 0 : i32
    %c0_i32_0 = arith.constant 0 : i32
    %c0_i32_1 = arith.constant 0 : i32
    return %c0_i32, %c0_i32_0 : i32, i32
  }
  func.func @transform_4(%arg0: i32) -> (i32, i32) {
    %c0_i32 = arith.constant 0 : i32
    %c0_i32_0 = arith.constant 0 : i32
    %c0_i32_1 = arith.constant 0 : i32
    return %c0_i32, %c0_i32_0 : i32, i32
  }
  func.func @transform_5(%arg0: i32) -> (i32, i32) {
    %c0_i32 = arith.constant 0 : i32
    %c0_i32_0 = arith.constant 0 : i32
    %c0_i32_1 = arith.constant 0 : i32
    return %c0_i32, %c0_i32_0 : i32, i32
  }
  func.func @transform_6(%arg0: i32) -> (i32, i32) {
    %c0_i32 = arith.constant 0 : i32
    %c0_i32_0 = arith.constant 0 : i32
    %c0_i32_1 = arith.constant 0 : i32
    return %c0_i32, %c0_i32_0 : i32, i32
  }
  func.func @transform_7(%arg0: i32) -> (i32, i32) {
    %c0_i32 = arith.constant 0 : i32
    %c0_i32_0 = arith.constant 0 : i32
    return %arg0, %c0_i32 : i32, i32
  }
}

</mosaic_0001>

<llo_original>
// kernel: tpu_custom_call.1
$region0: #{tpu_custom_call.1}
  #allocation0 [shape = 'u32[]', space=smem, size = 0x4, offset = 0x4, fixed_abs, tag = 'smem constant byte address 0x4 - core index']
  #allocation1 [shape = 'u32[144,128]{1,0:T(1,128)}', space=vmem, size = 0x12000, scoped, tag = 'internal scratch']
  %s0 = inlined_call_operand.vmem [shape: f32[64,48], index: 0, kind: input, shape index: {}]
  %s1 = inlined_call_operand.vmem [shape: f32[64,128], index: 1, kind: input, shape index: {}]
  %s2 = inlined_call_operand.vmem [shape: f32[48,128], index: 2, kind: input, shape index: {}]
  %s3 = inlined_call_operand.hbm [shape: f32[128,128], index: 3, kind: input, shape index: {}]
  %s4 = inlined_call_operand.vmem [shape: f32[1,128], index: 4, kind: input, shape index: {}]
  %s5 = inlined_call_operand.vmem [shape: f32[1,128], index: 5, kind: input, shape index: {}]
  %s6 = inlined_call_operand.vmem [shape: f32[1,128], index: 6, kind: input, shape index: {}]
  %s7 = inlined_call_operand.hbm [shape: f32[64,128], index: 7, kind: output, shape index: {}]
  %s8 = sld [smem:[#allocation0]]
  $region65: #{tpu_custom_call.1} parent=0
    _
  %s10 = ssub.s32 1, %s8
  %s11 = scalar_select 0, %s10, %s8
  $region1: #{tpu_custom_call.1} parent=0
    #allocation2 [shape = 'u8[65536]{0}', space=vmem, size = 0x10000, scoped, tag = 'input window, operand 3, single buffered']
    #allocation3 [shape = 's32[2]{0}', space=sflag, size = 0x8, scoped, tag = 'scoped memory for tpu_custom_call.1']
    #allocation4 [shape = 's32[2]{0}', space=sflag, size = 0x8, scoped, tag = 'scoped memory for tpu_custom_call.1']
    #allocation5 [shape = 'u8[32768]{0}', space=vmem, size = 0x8000, scoped, tag = 'output window, operand 0']
    %12 = vsyncpa [#allocation3], 0
    %13 = vsyncpa [#allocation4], 0
    %s14 = scalar_lea.sflag [#allocation4], 1
    %15 = vsyncpa %s14, 0
    loop: start=0, step=1, limit=4
    $region2: #{tpu_custom_call.1} parent=1 // loop_pre_header
      _
    $region3: #{tpu_custom_call.1} parent=1 // loop_header
      %s17 = sphi 0, %s21
      %p18 = scmp.ge.s32.totalorder %s17, 4
      %s27 = sphi 0, %s29
      %s30 = sphi 0, %s27
      %s31 = sphi 0, %s30
      %s47 = sphi 0, %s31
      %s53 = sphi 0, %s55
      %s56 = sphi 0, %s53
      %s57 = sphi 0, %s56
      %s73 = sphi 0, %s57
      %s77 = sphi 0, %s77
      %s79 = sphi 0, %s77
      %s80 = sphi 0, %s79
      %s94 = sphi 0, %s80
      %s98 = sphi 0, %s98
      %s100 = sphi 0, %s98
      %s101 = sphi 0, %s100
      %s115 = sphi 0, %s101
      %s119 = sphi 0, %s119
      %s121 = sphi 0, %s119
      %s122 = sphi 0, %s121
      %s136 = sphi 0, %s122
      %s140 = sphi 0, %s140
      %s142 = sphi 0, %s140
      %s143 = sphi 0, %s142
      %s157 = sphi 0, %s143
      %s161 = sphi 0, %s161
      %s163 = sphi 0, %s161
      %s164 = sphi 0, %s163
      %s178 = sphi 0, %s164
      %s184 = sphi 0, %s186
      %s187 = sphi 0, %s184
      %s188 = sphi 0, %s187
      %s204 = sphi 0, %s188
    $region4: #{tpu_custom_call.1} parent=1 // loop_header_branch
      %20 = sbr.rel (%p18) target = $region8
    $region5: #{tpu_custom_call.1} parent=1 // loop_body
      %s22 = ssub.s32 %s17, 1
      %s23 = ssub.s32 %s17, 2
      %s24 = sadd.s32 %s17, 1
      %s25 = ssub.s32 %s17, %s24
      %p26 = scmp.eq.s32.totalorder %s25, 0
      %s28 = sadd.s32 %s27, 1
      %s29 = scalar_select %p26, %s27, %s28
      %p32 = pneg %p26
      %p33 = scmp.eq.s32.totalorder %s17, 1
      %p34 = por %p32, %p33
      %p35 = scmp.ne.s32.totalorder %s27, %s30
      %p36 = scmp.eq.s32.totalorder %s17, 0
      %p37 = por %p35, %p36
      %p38 = scmp.ne.s32.totalorder %s27, %s30
      %p39 = scmp.eq.s32.totalorder %s22, 1
      %p40 = por %p38, %p39
      %p41 = scmp.ne.s32.totalorder %s30, %s31
      %p42 = scmp.eq.s32.totalorder %s22, 0
      %p43 = por %p41, %p42
      %p44 = scmp.ne.s32.totalorder %s30, %s31
      %p45 = scmp.eq.s32.totalorder %s23, 1
      %p46 = por %p44, %p45
      %p48 = scmp.ne.s32.totalorder %s31, %s47
      %p49 = scmp.eq.s32.totalorder %s23, 0
      %p50 = por %p48, %p49
      %s51 = ssub.s32 %s17, %s24
      %p52 = scmp.eq.s32.totalorder %s51, 0
      %s54 = sadd.s32 %s53, 1
      %s55 = scalar_select %p52, %s53, %s54
      %p58 = pneg %p52
      %p59 = scmp.eq.s32.totalorder %s17, 1
      %p60 = por %p58, %p59
      %p61 = scmp.ne.s32.totalorder %s53, %s56
      %p62 = scmp.eq.s32.totalorder %s17, 0
      %p63 = por %p61, %p62
      %p64 = scmp.ne.s32.totalorder %s53, %s56
      %p65 = scmp.eq.s32.totalorder %s22, 1
      %p66 = por %p64, %p65
      %p67 = scmp.ne.s32.totalorder %s56, %s57
      %p68 = scmp.eq.s32.totalorder %s22, 0
      %p69 = por %p67, %p68
      %p70 = scmp.ne.s32.totalorder %s56, %s57
      %p71 = scmp.eq.s32.totalorder %s23, 1
      %p72 = por %p70, %p71
      %p74 = scmp.ne.s32.totalorder %s57, %s73
      %p75 = scmp.eq.s32.totalorder %s23, 0
      %p76 = por %p74, %p75
      %s78 = sadd.s32 %s77, 1
      %p81 = scmp.eq.s32.totalorder %s17, 1
      %p82 = scmp.ne.s32.totalorder %s77, %s79
      %p83 = scmp.eq.s32.totalorder %s17, 0
      %p84 = por %p82, %p83
      %p85 = scmp.ne.s32.totalorder %s77, %s79
      %p86 = scmp.eq.s32.totalorder %s22, 1
      %p87 = por %p85, %p86
      %p88 = scmp.ne.s32.totalorder %s79, %s80
      %p89 = scmp.eq.s32.totalorder %s22, 0
      %p90 = por %p88, %p89
      %p91 = scmp.ne.s32.totalorder %s79, %s80
      %p92 = scmp.eq.s32.totalorder %s23, 1
      %p93 = por %p91, %p92
      %p95 = scmp.ne.s32.totalorder %s80, %s94
      %p96 = scmp.eq.s32.totalorder %s23, 0
      %p97 = por %p95, %p96
      %s99 = sadd.s32 %s98, 1
      %p102 = scmp.eq.s32.totalorder %s17, 1
      %p103 = scmp.ne.s32.totalorder %s98, %s100
      %p104 = scmp.eq.s32.totalorder %s17, 0
      %p105 = por %p103, %p104
      %p106 = scmp.ne.s32.totalorder %s98, %s100
      %p107 = scmp.eq.s32.totalorder %s22, 1
      %p108 = por %p106, %p107
      %p109 = scmp.ne.s32.totalorder %s100, %s101
      %p110 = scmp.eq.s32.totalorder %s22, 0
      %p111 = por %p109, %p110
      %p112 = scmp.ne.s32.totalorder %s100, %s101
      %p113 = scmp.eq.s32.totalorder %s23, 1
      %p114 = por %p112, %p113
      %p116 = scmp.ne.s32.totalorder %s101, %s115
      %p117 = scmp.eq.s32.totalorder %s23, 0
      %p118 = por %p116, %p117
      %s120 = sadd.s32 %s119, 1
      %p123 = scmp.eq.s32.totalorder %s17, 1
      %p124 = scmp.ne.s32.totalorder %s119, %s121
      %p125 = scmp.eq.s32.totalorder %s17, 0
      %p126 = por %p124, %p125
      %p127 = scmp.ne.s32.totalorder %s119, %s121
      %p128 = scmp.eq.s32.totalorder %s22, 1
      %p129 = por %p127, %p128
      %p130 = scmp.ne.s32.totalorder %s121, %s122
      %p131 = scmp.eq.s32.totalorder %s22, 0
      %p132 = por %p130, %p131
      %p133 = scmp.ne.s32.totalorder %s121, %s122
      %p134 = scmp.eq.s32.totalorder %s23, 1
      %p135 = por %p133, %p134
      %p137 = scmp.ne.s32.totalorder %s122, %s136
      %p138 = scmp.eq.s32.totalorder %s23, 0
      %p139 = por %p137, %p138
      %s141 = sadd.s32 %s140, 1
      %p144 = scmp.eq.s32.totalorder %s17, 1
      %p145 = scmp.ne.s32.totalorder %s140, %s142
      %p146 = scmp.eq.s32.totalorder %s17, 0
      %p147 = por %p145, %p146
      %p148 = scmp.ne.s32.totalorder %s140, %s142
      %p149 = scmp.eq.s32.totalorder %s22, 1
      %p150 = por %p148, %p149
      %p151 = scmp.ne.s32.totalorder %s142, %s143
      %p152 = scmp.eq.s32.totalorder %s22, 0
      %p153 = por %p151, %p152
      %p154 = scmp.ne.s32.totalorder %s142, %s143
      %p155 = scmp.eq.s32.totalorder %s23, 1
      %p156 = por %p154, %p155
      %p158 = scmp.ne.s32.totalorder %s143, %s157
      %p159 = scmp.eq.s32.totalorder %s23, 0
      %p160 = por %p158, %p159
      %s162 = sadd.s32 %s161, 1
      %p165 = scmp.eq.s32.totalorder %s17, 1
      %p166 = scmp.ne.s32.totalorder %s161, %s163
      %p167 = scmp.eq.s32.totalorder %s17, 0
      %p168 = por %p166, %p167
      %p169 = scmp.ne.s32.totalorder %s161, %s163
      %p170 = scmp.eq.s32.totalorder %s22, 1
      %p171 = por %p169, %p170
      %p172 = scmp.ne.s32.totalorder %s163, %s164
      %p173 = scmp.eq.s32.totalorder %s22, 0
      %p174 = por %p172, %p173
      %p175 = scmp.ne.s32.totalorder %s163, %s164
      %p176 = scmp.eq.s32.totalorder %s23, 1
      %p177 = por %p175, %p176
      %p179 = scmp.ne.s32.totalorder %s164, %s178
      %p180 = scmp.eq.s32.totalorder %s23, 0
      %p181 = por %p179, %p180
      %s182 = ssub.s32 %s17, %s24
      %p183 = scmp.eq.s32.totalorder %s182, 0
      %s185 = sadd.s32 %s184, 1
      %s186 = scalar_select %p183, %s184, %s185
      %p189 = pneg %p183
      %p190 = scmp.eq.s32.totalorder %s17, 1
      %p191 = por %p189, %p190
      %p192 = scmp.ne.s32.totalorder %s184, %s187
      %p193 = scmp.eq.s32.totalorder %s17, 0
      %p194 = por %p192, %p193
      %p195 = scmp.ne.s32.totalorder %s184, %s187
      %p196 = scmp.eq.s32.totalorder %s22, 1
      %p197 = por %p195, %p196
      %p198 = scmp.ne.s32.totalorder %s187, %s188
      %p199 = scmp.eq.s32.totalorder %s22, 0
      %p200 = por %p198, %p199
      %p201 = scmp.ne.s32.totalorder %s187, %s188
      %p202 = scmp.eq.s32.totalorder %s23, 1
      %p203 = por %p201, %p202
      %p205 = scmp.ne.s32.totalorder %s188, %s204
      %p206 = scmp.eq.s32.totalorder %s23, 0
      %p207 = por %p205, %p206
      %p208 = scmp.le.s32.totalorder 1, %s17
      %p209 = scmp.lt.s32.totalorder %s17, 3
      %p210 = pnand %p208, %p209
      %p211 = pneg %p210
      // Predicated region
      $region9: #{tpu_custom_call.1} parent=5 // pred_check
        _
      $region10: #{tpu_custom_call.1} parent=5 // pred_check_branch
        %213 = sbr.rel (%p210) target = $region12
      $region11: #{tpu_custom_call.1} parent=5 // pred_region
        %s214 = ssub.s32 %s17, 1
        // Predicated region
        $region13: #{tpu_custom_call.1} parent=11 // pred_check
          %p215 = pneg %p90
        $region14: #{tpu_custom_call.1} parent=11 // pred_check_branch
          %217 = sbr.rel (%p215) target = $region16
        $region15: #{tpu_custom_call.1} parent=11 // pred_region
          _
        $region16: #{tpu_custom_call.1} parent=11 // pred_fallthru
          _
        // Predicated region
        $region17: #{tpu_custom_call.1} parent=11 // pred_check
          %p218 = pneg %p111
        $region18: #{tpu_custom_call.1} parent=11 // pred_check_branch
          %220 = sbr.rel (%p218) target = $region20
        $region19: #{tpu_custom_call.1} parent=11 // pred_region
          %s222 = ssub.s32 2048, 2048
          %223 = vsyncadd [#allocation3], %s222
          %s224 = sshll.u32 [#allocation2], 4
          %s225 = int_to_ptr.vmem [resolvable:$true] %s224
          %230 = dma.hbm_to_vmem [thread:$0]  %s3, 2048, %s225, [#allocation3], 128, 128, 8
        $region20: #{tpu_custom_call.1} parent=11 // pred_fallthru
          _
        // Predicated region
        $region21: #{tpu_custom_call.1} parent=11 // pred_check
          %p231 = pneg %p132
        $region22: #{tpu_custom_call.1} parent=11 // pred_check_branch
          %233 = sbr.rel (%p231) target = $region24
        $region23: #{tpu_custom_call.1} parent=11 // pred_region
          _
        $region24: #{tpu_custom_call.1} parent=11 // pred_fallthru
          _
        // Predicated region
        $region25: #{tpu_custom_call.1} parent=11 // pred_check
          %p234 = pneg %p153
        $region26: #{tpu_custom_call.1} parent=11 // pred_check_branch
          %236 = sbr.rel (%p234) target = $region28
        $region27: #{tpu_custom_call.1} parent=11 // pred_region
          _
        $region28: #{tpu_custom_call.1} parent=11 // pred_fallthru
          _
        // Predicated region
        $region29: #{tpu_custom_call.1} parent=11 // pred_check
          %p237 = pneg %p174
        $region30: #{tpu_custom_call.1} parent=11 // pred_check_branch
          %239 = sbr.rel (%p237) target = $region32
        $region31: #{tpu_custom_call.1} parent=11 // pred_region
          _
        $region32: #{tpu_custom_call.1} parent=11 // pred_fallthru
          _
      $region12: #{tpu_custom_call.1} parent=5 // pred_fallthru
        _
      %p240 = scmp.lt.s32.totalorder %s17, 2
      // Predicated region
      $region33: #{tpu_custom_call.1} parent=5 // pred_check
        %p241 = pneg %p240
      $region34: #{tpu_custom_call.1} parent=5 // pred_check_branch
        %243 = sbr.rel (%p241) target = $region36
      $region35: #{tpu_custom_call.1} parent=5 // pred_region
        // Predicated region
        $region37: #{tpu_custom_call.1} parent=35 // pred_check
          %p244 = pneg %p37
        $region38: #{tpu_custom_call.1} parent=35 // pred_check_branch
          %246 = sbr.rel (%p244) target = $region40
        $region39: #{tpu_custom_call.1} parent=35 // pred_region
          %s247 = smul.u32 4, %s17
          %p248 = scmp.lt.s32.totalorder %s247, 7
          %s249 = scalar_select %p248, %s247, 7
          %s250 = smul.addr %s249, 8
          %s251 = scalar_lea.vmem %s0, %s250
          %s252 = smul.u32 4, %s17
        $region40: #{tpu_custom_call.1} parent=35 // pred_fallthru
          _
        // Predicated region
        $region41: #{tpu_custom_call.1} parent=35 // pred_check
          %p253 = pneg %p63
        $region42: #{tpu_custom_call.1} parent=35 // pred_check_branch
          %255 = sbr.rel (%p253) target = $region44
        $region43: #{tpu_custom_call.1} parent=35 // pred_region
          %s256 = smul.u32 4, %s17
          %p257 = scmp.lt.s32.totalorder %s256, 7
          %s258 = scalar_select %p257, %s256, 7
          %s259 = smul.addr %s258, 8
          %s260 = scalar_lea.vmem %s1, %s259
          %s261 = smul.u32 4, %s17
        $region44: #{tpu_custom_call.1} parent=35 // pred_fallthru
          _
      $region36: #{tpu_custom_call.1} parent=5 // pred_fallthru
        _
      %p262 = scmp.le.s32.totalorder 1, %s17
      %p263 = scmp.lt.s32.totalorder %s17, 3
      %p264 = pnand %p262, %p263
      %p265 = pneg %p264
      // Predicated region
      $region45: #{tpu_custom_call.1} parent=5 // pred_check
        _
      $region46: #{tpu_custom_call.1} parent=5 // pred_check_branch
        %267 = sbr.rel (%p264) target = $region48
      $region47: #{tpu_custom_call.1} parent=5 // pred_region
        %s268 = ssub.s32 %s17, 1
        // Predicated region
        $region49: #{tpu_custom_call.1} parent=47 // pred_check
          %p269 = pneg %p111
        $region50: #{tpu_custom_call.1} parent=47 // pred_check_branch
          %271 = sbr.rel (%p269) target = $region52
        $region51: #{tpu_custom_call.1} parent=47 // pred_region
          %272 = dma.done [#allocation3], 2048
        $region52: #{tpu_custom_call.1} parent=47 // pred_fallthru
          _
        %s273 = smul.u32 4, %s22
        %p274 = scmp.lt.s32.totalorder %s273, 7
        %s275 = scalar_select %p274, %s273, 7
        %s276 = smul.addr %s275, 8
        %s277 = scalar_lea.vmem %s0, %s276
        %p278 = pneg %p43
        %p279 = pneg %p40
        %s280 = smul.u32 4, %s22
        %p281 = scmp.lt.s32.totalorder %s280, 7
        %s282 = scalar_select %p281, %s280, 7
        %s283 = smul.addr %s282, 8
        %s284 = scalar_lea.vmem %s1, %s283
        %p285 = pneg %p69
        %p286 = pneg %p66
        %p287 = pneg %p90
        %p288 = pneg %p87
        %p289 = pneg %p111
        %p290 = pneg %p108
        %p291 = pneg %p132
        %p292 = pneg %p129
        %p293 = pneg %p153
        %p294 = pneg %p150
        %p295 = pneg %p174
        %p296 = pneg %p171
        %p297 = pneg %p200
        %p298 = pneg %p197
        %s299 = sand.u32 %s187, 1
        %s300 = scalar_lea.sflag [#allocation4], %s299
        %s301 = sand.u32 %s187, 1
        %s302 = smul.addr %s301, 32
        %s303 = scalar_lea.vmem [#allocation5], %s302
        %s304 = smul.u32 4, %s22
        %p305 = scmp.lt.s32.totalorder %s304, 7
        %s306 = scalar_select %p305, %s304, 7
        %s307 = smul.addr %s306, 8
        %s308 = scalar_lea.vmem %s0, %s307
        %s309 = smul.u32 4, %s22
        %s310 = smul.u32 4, %s22
        %p311 = scmp.lt.s32.totalorder %s310, 7
        %s312 = scalar_select %p311, %s310, 7
        %s313 = smul.addr %s312, 8
        %s314 = scalar_lea.vmem %s1, %s313
        %s315 = smul.u32 4, %s22
        %s316 = smul.u32 4, %s22
        %v317 = vld [vmem:[%s308] sm:$0xff]
        %v318 = vld [vmem:[%s308 + $0x8] sm:$0xff]
        %v319 = vld [vmem:[%s308 + $0x10] sm:$0xff]
        %v320 = vld [vmem:[%s308 + $0x18] sm:$0xff]
        %v321 = vld [vmem:[%s2] sm:$0xff]
        %v322 = vld [vmem:[%s2 + $0x8] sm:$0xff]
        %v323 = vld [vmem:[%s2 + $0x10] sm:$0xff]
        %v324 = vld [vmem:[%s2 + $0x18] sm:$0xff]
        %v325 = vld [vmem:[%s2 + $0x20] sm:$0xff]
        %v326 = vld [vmem:[%s2 + $0x28] sm:$0xff]
        %v327 = vld [vmem:[%s314] sm:$0xff]
        %v328 = vld [vmem:[%s314 + $0x8] sm:$0xff]
        %v329 = vld [vmem:[%s314 + $0x10] sm:$0xff]
        %v330 = vld [vmem:[%s314 + $0x18] sm:$0xff]
        %v331 = vld [vmem:[#allocation2] sm:$0xff]
        %v332 = vld [vmem:[#allocation2 + $0x8] sm:$0xff]
        %v333 = vld [vmem:[#allocation2 + $0x10] sm:$0xff]
        %v334 = vld [vmem:[#allocation2 + $0x18] sm:$0xff]
        %v335 = vld [vmem:[#allocation2 + $0x20] sm:$0xff]
        %v336 = vld [vmem:[#allocation2 + $0x28] sm:$0xff]
        %v337 = vld [vmem:[#allocation2 + $0x30] sm:$0xff]
        %v338 = vld [vmem:[#allocation2 + $0x38] sm:$0xff]
        %v339 = vld [vmem:[#allocation2 + $0x40] sm:$0xff]
        %v340 = vld [vmem:[#allocation2 + $0x48] sm:$0xff]
        %v341 = vld [vmem:[#allocation2 + $0x50] sm:$0xff]
        %v342 = vld [vmem:[#allocation2 + $0x58] sm:$0xff]
        %v343 = vld [vmem:[#allocation2 + $0x60] sm:$0xff]
        %v344 = vld [vmem:[#allocation2 + $0x68] sm:$0xff]
        %v345 = vld [vmem:[#allocation2 + $0x70] sm:$0xff]
        %v346 = vld [vmem:[#allocation2 + $0x78] sm:$0xff]
        %347 = vmatprep.subr.mxu0 0.0
        %348 = vmatpush1.msra.mxu0 %v331
        %349 = vmatprep.subr.mxu0 0.0
        %350 = vmatpush1.msra.mxu0 %v332
        %351 = vmatprep.subr.mxu0 0.0
        %352 = vmatpush1.msra.mxu0 %v333
        %353 = vmatprep.subr.mxu0 0.0
        %354 = vmatpush1.msra.mxu0 %v334
        %355 = vmatprep.subr.mxu0 0.0
        %356 = vmatpush1.msra.mxu0 %v335
        %357 = vmatprep.subr.mxu0 0.0
        %358 = vmatpush1.msra.mxu0 %v336
        %359 = vmatprep.subr.mxu0 0.0
        %360 = vmatpush1.msra.mxu0 %v337
        %361 = vmatprep.subr.mxu0 0.0
        %362 = vmatpush1.msra.mxu0 %v338
        %363 = vmatprep.subr.mxu0 0.0
        %364 = vmatpush1.msra.mxu0 %v339
        %365 = vmatprep.subr.mxu0 0.0
        %366 = vmatpush1.msra.mxu0 %v340
        %367 = vmatprep.subr.mxu0 0.0
        %368 = vmatpush1.msra.mxu0 %v341
        %369 = vmatprep.subr.mxu0 0.0
        %370 = vmatpush1.msra.mxu0 %v342
        %371 = vmatprep.subr.mxu0 0.0
        %372 = vmatpush1.msra.mxu0 %v343
        %373 = vmatprep.subr.mxu0 0.0
        %374 = vmatpush1.msra.mxu0 %v344
        %375 = vmatprep.subr.mxu0 0.0
        %376 = vmatpush1.msra.mxu0 %v345
        %377 = vmatprep.subr.mxu0 0.0
        %378 = vmatpush1.msra.mxu0 %v346
        %379 = vmatprep.subr.mxu0 0.0
        %380 = vmatpush1.msra.mxu0 0.0
        %381 = vmatprep.subr.mxu0 0.0
        %382 = vmatpush1.msra.mxu0 0.0
        %383 = vmatprep.subr.mxu0 0.0
        %384 = vmatpush1.msra.mxu0 0.0
        %385 = vmatprep.subr.mxu0 0.0
        %386 = vmatpush1.msra.mxu0 0.0
        %387 = vmatprep.subr.mxu0 0.0
        %388 = vmatpush1.msra.mxu0 0.0
        %389 = vmatprep.subr.mxu0 0.0
        %390 = vmatpush1.msra.mxu0 0.0
        %391 = vmatprep.subr.mxu0 0.0
        %392 = vmatpush1.msra.mxu0 0.0
        %393 = vmatprep.subr.mxu0 0.0
        %394 = vmatpush1.msra.mxu0 0.0
        %395 = vmatprep.subr.mxu0 0.0
        %396 = vmatpush1.msra.mxu0 0.0
        %397 = vmatprep.subr.mxu0 0.0
        %398 = vmatpush1.msra.mxu0 0.0
        %399 = vmatprep.subr.mxu0 0.0
        %400 = vmatpush1.msra.mxu0 0.0
        %401 = vmatprep.subr.mxu0 0.0
        %402 = vmatpush1.msra.mxu0 0.0
        %403 = vmatprep.subr.mxu0 0.0
        %404 = vmatpush1.msra.mxu0 0.0
        %405 = vmatprep.subr.mxu0 0.0
        %406 = vmatpush1.msra.mxu0 0.0
        %407 = vmatprep.subr.mxu0 0.0
        %408 = vmatpush1.msra.mxu0 0.0
        %409 = vmatprep.subr.mxu0 0.0
        %410 = vmatpush1.msra.mxu0 0.0
        %411 = vmatprep.mubr.f32.mxu0 0.0
        %412 = vmatmul.mubr.f32.gmra.mrb[0].mxu0 %v327
        %v413 = vpop.f32.mrb[0].mxu0
        %v414 = vadd.f32 0.0, %v413
        %v415 = vpop.f32.mrb[0].mxu0
        %416 = vmatprep.mubr.f32.mxu0 0.0
        %417 = vmatmul.mubr.f32.gmra.mrb[0].mxu0 %v328
        %v418 = vpop.f32.mrb[0].mxu0
        %v419 = vadd.f32 0.0, %v418
        %v420 = vpop.f32.mrb[0].mxu0
        %421 = vmatprep.mubr.f32.mxu0 0.0
        %422 = vmatmul.mubr.f32.gmra.mrb[0].mxu0 %v329
        %v423 = vpop.f32.mrb[0].mxu0
        %v424 = vadd.f32 0.0, %v423
        %v425 = vpop.f32.mrb[0].mxu0
        %426 = vmatprep.mubr.f32.mxu0 0.0
        %427 = vmatmul.mubr.f32.gmra.mrb[0].mxu0 %v330
        %v428 = vpop.f32.mrb[0].mxu0
        %v429 = vadd.f32 0.0, %v428
        %v430 = vpop.f32.mrb[0].mxu0
        %431 = vdwg.mxu0
        %vm432 = vcmask 392192
        %v434 = vsel %vm432, %v317, 0
        %v437 = vsel %vm432, %v318, 0
        %v440 = vsel %vm432, %v319, 0
        %v443 = vsel %vm432, %v320, 0
        %445 = vmatprep.subr.mxu0 0.0
        %446 = vmatpush1.msra.mxu0 %v321
        %447 = vmatprep.subr.mxu0 0.0
        %448 = vmatpush1.msra.mxu0 %v322
        %449 = vmatprep.subr.mxu0 0.0
        %450 = vmatpush1.msra.mxu0 %v323
        %451 = vmatprep.subr.mxu0 0.0
        %452 = vmatpush1.msra.mxu0 %v324
        %453 = vmatprep.subr.mxu0 0.0
        %454 = vmatpush1.msra.mxu0 %v325
        %455 = vmatprep.subr.mxu0 0.0
        %456 = vmatpush1.msra.mxu0 %v326
        %457 = vmatprep.subr.mxu0 0.0
        %458 = vmatpush1.msra.mxu0 0.0
        %459 = vmatprep.subr.mxu0 0.0
        %460 = vmatpush1.msra.mxu0 0.0
        %461 = vmatprep.subr.mxu0 0.0
        %462 = vmatpush1.msra.mxu0 0.0
        %463 = vmatprep.subr.mxu0 0.0
        %464 = vmatpush1.msra.mxu0 0.0
        %465 = vmatprep.subr.mxu0 0.0
        %466 = vmatpush1.msra.mxu0 0.0
        %467 = vmatprep.subr.mxu0 0.0
        %468 = vmatpush1.msra.mxu0 0.0
        %469 = vmatprep.subr.mxu0 0.0
        %470 = vmatpush1.msra.mxu0 0.0
        %471 = vmatprep.subr.mxu0 0.0
        %472 = vmatpush1.msra.mxu0 0.0
        %473 = vmatprep.subr.mxu0 0.0
        %474 = vmatpush1.msra.mxu0 0.0
        %475 = vmatprep.subr.mxu0 0.0
        %476 = vmatpush1.msra.mxu0 0.0
        %477 = vmatprep.subr.mxu0 0.0
        %478 = vmatpush1.msra.mxu0 0.0
        %479 = vmatprep.subr.mxu0 0.0
        %480 = vmatpush1.msra.mxu0 0.0
        %481 = vmatprep.subr.mxu0 0.0
        %482 = vmatpush1.msra.mxu0 0.0
        %483 = vmatprep.subr.mxu0 0.0
        %484 = vmatpush1.msra.mxu0 0.0
        %485 = vmatprep.subr.mxu0 0.0
        %486 = vmatpush1.msra.mxu0 0.0
        %487 = vmatprep.subr.mxu0 0.0
        %488 = vmatpush1.msra.mxu0 0.0
        %489 = vmatprep.subr.mxu0 0.0
        %490 = vmatpush1.msra.mxu0 0.0
        %491 = vmatprep.subr.mxu0 0.0
        %492 = vmatpush1.msra.mxu0 0.0
        %493 = vmatprep.subr.mxu0 0.0
        %494 = vmatpush1.msra.mxu0 0.0
        %495 = vmatprep.subr.mxu0 0.0
        %496 = vmatpush1.msra.mxu0 0.0
        %497 = vmatprep.subr.mxu0 0.0
        %498 = vmatpush1.msra.mxu0 0.0
        %499 = vmatprep.subr.mxu0 0.0
        %500 = vmatpush1.msra.mxu0 0.0
        %501 = vmatprep.subr.mxu0 0.0
        %502 = vmatpush1.msra.mxu0 0.0
        %503 = vmatprep.subr.mxu0 0.0
        %504 = vmatpush1.msra.mxu0 0.0
        %505 = vmatprep.subr.mxu0 0.0
        %506 = vmatpush1.msra.mxu0 0.0
        %507 = vmatprep.subr.mxu0 0.0
        %508 = vmatpush1.msra.mxu0 0.0
        %509 = vmatprep.mubr.f32.mxu0 0.0
        %510 = vmatmul.mubr.f32.gmra.mrb[0].mxu0 %v434
        %v511 = vpop.f32.mrb[0].mxu0
        %v512 = vadd.f32 %v414, %v511
        %v513 = vpop.f32.mrb[0].mxu0
        %514 = vmatprep.mubr.f32.mxu0 0.0
        %515 = vmatmul.mubr.f32.gmra.mrb[0].mxu0 %v437
        %v516 = vpop.f32.mrb[0].mxu0
        %v517 = vadd.f32 %v419, %v516
        %v518 = vpop.f32.mrb[0].mxu0
        %519 = vmatprep.mubr.f32.mxu0 0.0
        %520 = vmatmul.mubr.f32.gmra.mrb[0].mxu0 %v440
        %v521 = vpop.f32.mrb[0].mxu0
        %v522 = vadd.f32 %v424, %v521
        %v523 = vpop.f32.mrb[0].mxu0
        %524 = vmatprep.mubr.f32.mxu0 0.0
        %525 = vmatmul.mubr.f32.gmra.mrb[0].mxu0 %v443
        %v526 = vpop.f32.mrb[0].mxu0
        %v527 = vadd.f32 %v429, %v526
        %v528 = vpop.f32.mrb[0].mxu0
        %529 = vdwg.mxu0
        %v530 = vld [vmem:[%s4] sm:$0x1]
        %v532 = vlaneseq
        %v533 = vshrl.u32 %v532, 7
        %v534 = vsub.s32 0, %v533
        %v535 = vrot.slane %v530, %v534
        %v537 = vadd.f32 %v512, %v535
        %v538 = vadd.f32 %v517, %v535
        %v539 = vadd.f32 %v522, %v535
        %v540 = vadd.f32 %v527, %v535
        %541 = vadd.xlane.f32.xlu0 %v537
        %v542 = vpop.xlane.xlu0 %541
        %543 = vadd.xlane.f32.xlu0 %v538
        %v544 = vpop.xlane.xlu0 %543
        %545 = vadd.xlane.f32.xlu0 %v539
        %v546 = vpop.xlane.xlu0 %545
        %547 = vadd.xlane.f32.xlu0 %v540
        %v548 = vpop.xlane.xlu0 %547
        %v549 = vrcp.pop 128.0
        %v550 = vmul.f32 %v542, %v549
        %v551 = vmul.f32 %v544, %v549
        %v552 = vmul.f32 %v546, %v549
        %v553 = vmul.f32 %v548, %v549
        %v554 = vsub.f32 %v537, %v550
        %v555 = vsub.f32 %v538, %v551
        %v556 = vsub.f32 %v539, %v552
        %v557 = vsub.f32 %v540, %v553
        %v558 = vmul.f32 %v554, %v554
        %v559 = vmul.f32 %v555, %v555
        %v560 = vmul.f32 %v556, %v556
        %v561 = vmul.f32 %v557, %v557
        %562 = vadd.xlane.f32.xlu0 %v558
        %v563 = vpop.xlane.xlu0 %562
        %564 = vadd.xlane.f32.xlu0 %v559
        %v565 = vpop.xlane.xlu0 %564
        %566 = vadd.xlane.f32.xlu0 %v560
        %v567 = vpop.xlane.xlu0 %566
        %568 = vadd.xlane.f32.xlu0 %v561
        %v569 = vpop.xlane.xlu0 %568
        %v570 = vmul.f32 %v563, 0.007874016
        %v571 = vmul.f32 %v565, 0.007874016
        %v572 = vmul.f32 %v567, 0.007874016
        %v573 = vmul.f32 %v569, 0.007874016
        %v574 = vadd.f32 %v570, 1e-05
        %v575 = vadd.f32 %v571, 1e-05
        %v576 = vadd.f32 %v572, 1e-05
        %v577 = vadd.f32 %v573, 1e-05
        %v578 = vrsqrt.pop %v574
        %v579 = vrsqrt.pop %v575
        %v580 = vrsqrt.pop %v576
        %v581 = vrsqrt.pop %v577
        %v582 = vmul.f32 %v554, %v578
        %v583 = vmul.f32 %v555, %v579
        %v584 = vmul.f32 %v556, %v580
        %v585 = vmul.f32 %v557, %v581
        %v586 = vld [vmem:[%s5] sm:$0x1]
        %v588 = vlaneseq
        %v589 = vshrl.u32 %v588, 7
        %v590 = vsub.s32 0, %v589
        %v591 = vrot.slane %v586, %v590
        %v593 = vmul.f32 %v591, %v582
        %v594 = vmul.f32 %v591, %v583
        %v595 = vmul.f32 %v591, %v584
        %v596 = vmul.f32 %v591, %v585
        %v597 = vld [vmem:[%s6] sm:$0x1]
        %v599 = vlaneseq
        %v600 = vshrl.u32 %v599, 7
        %v601 = vsub.s32 0, %v600
        %v602 = vrot.slane %v597, %v601
        %v604 = vadd.f32 %v593, %v602
        %v605 = vadd.f32 %v594, %v602
        %v606 = vadd.f32 %v595, %v602
        %v607 = vadd.f32 %v596, %v602
        %v608 = vtanh.pop %v604
        %v609 = vtanh.pop %v605
        %v610 = vtanh.pop %v606
        %v611 = vtanh.pop %v607
        %612 = vst [vmem:[%s303] sm:$0xff] %v608
        %613 = vst [vmem:[%s303 + $0x8] sm:$0xff] %v609
        %614 = vst [vmem:[%s303 + $0x10] sm:$0xff] %v610
        %615 = vst [vmem:[%s303 + $0x18] sm:$0xff] %v611
        %s616 = sand.u32 %s187, 1
        %s617 = scalar_lea.sflag [#allocation4], %s616
        %s618 = sand.u32 %s187, 1
        %s619 = smul.addr %s618, 32
        %s620 = scalar_lea.vmem [#allocation5], %s619
        // Predicated region
        $region53: #{tpu_custom_call.1} parent=47 // pred_check
          %p621 = pneg %p197
        $region54: #{tpu_custom_call.1} parent=47 // pred_check_branch
          %623 = sbr.rel (%p621) target = $region56
        $region55: #{tpu_custom_call.1} parent=47 // pred_region
          %s624 = smul.u32 4, %s22
          %s626 = ssub.s32 512, 512
          %627 = vsyncadd %s617, %s626
          %s628 = smul.addr %s624, 128
          %s629 = scalar_lea.hbm %s7, %s628
          %s630 = sshll.u32 %s620, 4
          %s631 = int_to_ptr.vmem [resolvable:$true] %s630
          %636 = dma.vmem_to_hbm [thread:$0]  %s631, 512, %s629, %s617, 128, 128, 8
        $region56: #{tpu_custom_call.1} parent=47 // pred_fallthru
          _
      $region48: #{tpu_custom_call.1} parent=5 // pred_fallthru
        _
      %p637 = scmp.le.s32.totalorder 2, %s17
      // Predicated region
      $region57: #{tpu_custom_call.1} parent=5 // pred_check
        %p638 = pneg %p637
      $region58: #{tpu_custom_call.1} parent=5 // pred_check_branch
        %640 = sbr.rel (%p638) target = $region60
      $region59: #{tpu_custom_call.1} parent=5 // pred_region
        %s641 = ssub.s32 %s17, 2
        // Predicated region
        $region61: #{tpu_custom_call.1} parent=59 // pred_check
          %p642 = pneg %p203
        $region62: #{tpu_custom_call.1} parent=59 // pred_check_branch
          %644 = sbr.rel (%p642) target = $region64
        $region63: #{tpu_custom_call.1} parent=59 // pred_region
          %s645 = sand.u32 %s188, 1
          %s646 = scalar_lea.sflag [#allocation4], %s645
          %s647 = sand.u32 %s188, 1
          %s648 = smul.addr %s647, 32
          %s649 = scalar_lea.vmem [#allocation5], %s648
          %650 = dma.done %s646, 512
        $region64: #{tpu_custom_call.1} parent=59 // pred_fallthru
          _
      $region60: #{tpu_custom_call.1} parent=5 // pred_fallthru
        _
    $region6: #{tpu_custom_call.1} parent=1 // loop_footer
      %s21 = sadd.s32 1, %s17
    $region7: #{tpu_custom_call.1} parent=1 // loop_footer_branch
      %16 = sbr.rel target = $region3
    $region8: #{tpu_custom_call.1} parent=1 // loop_exit
      _
    %651 = vsyncpa [#allocation3], 1
    %s652 = scalar_lea.sflag [#allocation3], 1
    %653 = vsyncpa %s652, 1
    %654 = vsyncpa [#allocation4], 1
    %s655 = scalar_lea.sflag [#allocation4], 1
    %656 = vsyncpa %s655, 1

</llo_original>
